<compile_context>
chip_gen: v6e
topology: v6e:2x2x1
jax: 0.10.0
libtpu: 0.0.40
codegen_flags: <defaults>
</compile_context>

<pallas_src>
import functools
import itertools

import numpy as np
import jax
import jax.numpy as jnp
from jax import lax
from jax.experimental import pallas as pl
from jax.experimental.pallas import tpu as pltpu


def _round_up(n, m):
    return ((n + m - 1) // m) * m


def _device_tuning():
    """Per-TPU-generation knobs: q-tile size, elementwise dtype, scoped-VMEM budget."""
    kind = ""
    try:
        kind = jax.devices()[0].device_kind.lower()
    except Exception:
        pass
    # v5e and older: 128-wide MXUs, no bf16 VPU/EUP -> tq=128, f32 elementwise.
    old_gen = any(s in kind for s in ("v2", "v3", "v4", "v5"))
    tq_max = 128 if old_gen else 256                      # fill v6e/v7x 256-wide MXU
    compute_dtype = jnp.float32 if old_gen else jnp.bfloat16
    # v7x has 64 MiB VMEM/TC (vs 128 MiB on v5e/v6e): keep the scoped budget under it.
    is_v7 = ("v7" in kind) or ("tpu7" in kind)
    vmem_limit = (48 << 20) if is_v7 else (64 << 20)
    return tq_max, compute_dtype, vmem_limit


# ----------------------------------------------------------------------------
# Pallas kernel: per (batch, Q-tile, P-chunk) accumulation of the [tq, T_pad] cost block
# ----------------------------------------------------------------------------
def _matcher_cost_kernel(w_class, w_mask, w_dice, inv_num_points, compute_dtype,
                         prob_ref, onehot_ref, sp_ref, sig_ref, tpsum_ref,
                         x_ref, tpT_ref, c_ref, nm_ref):
    p = pl.program_id(2)
    dn = (((1,), (0,)), ((), ()))    # plain [M, K] @ [K, N]

    # ---- P-independent terms, once per (batch, q-tile): tiny-K classification dot and
    #      the hoisted BCE positive-part row-sum seed the output accumulator.
    @pl.when(p == 0)
    def _init():
        cls = lax.dot_general(prob_ref[0], onehot_ref[0], dn,
                              preferred_element_type=jnp.float32)       # [tq, T_pad]
        c_ref[0] = (-w_class) * cls + (w_mask * inv_num_points) * sp_ref[0]
        nm_ref[...] = jnp.zeros_like(nm_ref)

    x = x_ref[0]                     # bf16 [tq, Pk]      pred-mask logits chunk
    tpT = tpT_ref[0]                 # bf16 [Pk, T_pad]   target points chunk (transposed)

    # ---- sigmoid-BCE cross term:  -w_mask/P * (x @ tgt^T), accumulated into the output
    #      block (which is VMEM-resident across the "arbitrary" P axis).
    mm = lax.dot_general(x, tpT, dn, preferred_element_type=jnp.float32)
    c_ref[0] += (-w_mask * inv_num_points) * mm

    # ---- dice numerator:  sigmoid(x) @ tgt^T, sigmoid = 0.5*tanh(x/2)+0.5 (single EUP op;
    #      bf16 datapath on v6e/v7x, f32 on v5e).
    xc = x.astype(compute_dtype)
    sig = jnp.tanh(xc * 0.5) * 0.5 + 0.5
    nm_ref[...] += lax.dot_general(sig.astype(tpT.dtype), tpT, dn,
                                   preferred_element_type=jnp.float32)

    # ---- finalize dice with the hoisted per-query / per-target sums (exact f32 division;
    #      runs once per (batch, q-tile)).
    @pl.when(p == pl.num_programs(2) - 1)
    def _fin():
        numer = 2.0 * nm_ref[...] + 1.0
        denom = sig_ref[0] + tpsum_ref[0] + 1.0           # [tq, 1] + [1, T_pad]
        c_ref[0] += w_dice * (1.0 - numer / denom)


def _matcher_cost_pallas(prob, onehot_ct, sp_row, sig_row, tp_sum, out_pts, tgt_pts_t,
                         *, w_class, w_mask, w_dice, num_points, tq, pk,
                         compute_dtype, vmem_limit_bytes):
    B, Q_pad, C = prob.shape
    P_pad = out_pts.shape[2]
    T_pad = tgt_pts_t.shape[2]
    assert Q_pad % tq == 0 and P_pad % pk == 0

    kernel = functools.partial(_matcher_cost_kernel, float(w_class), float(w_mask),
                               float(w_dice), 1.0 / float(num_points), compute_dtype)
    return pl.pallas_call(
        kernel,
        out_shape=jax.ShapeDtypeStruct((B, Q_pad, T_pad), jnp.float32),
        grid=(B, Q_pad // tq, P_pad // pk),
        in_specs=[
            pl.BlockSpec((1, tq, C), lambda b, q, p: (b, q, 0)),        # prob (bf16)
            pl.BlockSpec((1, C, T_pad), lambda b, q, p: (b, 0, 0)),     # onehot^T (bf16)
            pl.BlockSpec((1, tq, 1), lambda b, q, p: (b, q, 0)),        # sum softplus(x)
            pl.BlockSpec((1, tq, 1), lambda b, q, p: (b, q, 0)),        # sum sigmoid(x)
            pl.BlockSpec((1, 1, T_pad), lambda b, q, p: (b, 0, 0)),     # sum tgt
            pl.BlockSpec((1, tq, pk), lambda b, q, p: (b, q, p)),       # x chunk (bf16)
            pl.BlockSpec((1, pk, T_pad), lambda b, q, p: (b, p, 0)),    # tgt^T chunk (bf16)
        ],
        out_specs=pl.BlockSpec((1, tq, T_pad), lambda b, q, p: (b, q, 0)),
        scratch_shapes=[pltpu.VMEM((tq, T_pad), jnp.float32)],          # dice numerator acc
        compiler_params=pltpu.CompilerParams(
            dimension_semantics=("parallel", "parallel", "arbitrary"),
            vmem_limit_bytes=vmem_limit_bytes),
    )(prob, onehot_ct, sp_row, sig_row, tp_sum, out_pts, tgt_pts_t)


# ----------------------------------------------------------------------------
# Point sampling (plain JAX) + batched prep feeding the kernel
# ----------------------------------------------------------------------------
def point_sample(masks, coords):
    """Bilinear point sampling, grid_sample semantics with align_corners=False.

    masks:  [N, H, W] float; coords: [P, 2] in [0, 1], (x, y) ordering. Returns [N, P].
    """
    # TODO(synk): data-dependent bilinear gather (grid_sample); kept in plain JAX.
    N, H, W = masks.shape
    grid = 2.0 * coords - 1.0
    x = ((grid[:, 0] + 1.0) * W - 1.0) / 2.0
    y = ((grid[:, 1] + 1.0) * H - 1.0) / 2.0
    x0 = jnp.floor(x).astype(jnp.int32)
    y0 = jnp.floor(y).astype(jnp.int32)
    x1 = x0 + 1
    y1 = y0 + 1
    wx1 = x - x0.astype(x.dtype)
    wx0 = 1.0 - wx1
    wy1 = y - y0.astype(y.dtype)
    wy0 = 1.0 - wy1

    def gather(yi, xi):
        valid = ((xi >= 0) & (xi < W) & (yi >= 0) & (yi < H)).astype(masks.dtype)
        xc = jnp.clip(xi, 0, W - 1)
        yc = jnp.clip(yi, 0, H - 1)
        return masks[:, yc, xc] * valid[None, :]

    return (gather(y0, x0) * (wy0 * wx0)[None, :]
            + gather(y0, x1) * (wy0 * wx1)[None, :]
            + gather(y1, x0) * (wy1 * wx0)[None, :]
            + gather(y1, x1) * (wy1 * wx1)[None, :])


def _prep_and_cost(pred_logits, obj_logits, pred_masks, tgt_masks, tgt_labels, coords,
                   *, w_class, w_mask, w_dice, tq_max, compute_dtype, vmem_limit_bytes):
    """Batched point sampling + hoisted reductions/probabilities + Pallas cost kernel."""
    B, Q, C = pred_logits.shape
    T = tgt_labels.shape[1]
    P = coords.shape[1]

    out_pts = jax.vmap(point_sample)(pred_masks.astype(jnp.float32), coords)   # [B, Q, P]
    tgt_pts = jax.vmap(point_sample)(tgt_masks.astype(jnp.float32), coords)    # [B, T, P]

    # T-independent per-query reductions hoisted out of the kernel (exact f32 over the
    # true P points; fuse with the point_sample producer in XLA).
    sp_row = jnp.sum(jax.nn.softplus(out_pts), axis=-1, keepdims=True)          # [B, Q, 1]
    sig_row = jnp.sum(jax.nn.sigmoid(out_pts), axis=-1, keepdims=True)          # [B, Q, 1]
    tp_sum = jnp.sum(tgt_pts, axis=-1)[:, None, :]                              # [B, 1, T]

    # classification probability (trivial elementwise on [B, Q, C]; hoisted to XLA)
    cls_sig = jax.nn.sigmoid(pred_logits[..., :-1].astype(jnp.float32))
    obj_prob = jax.nn.softmax(obj_logits.astype(jnp.float32), axis=-1)
    prob_full = jnp.concatenate([jnp.sqrt(cls_sig * obj_prob[..., 0:1]),
                                 obj_prob[..., 1:2]], axis=-1)                   # [B, Q, C]
    onehot = jax.nn.one_hot(tgt_labels, C, dtype=jnp.float32)                    # [B, T, C]

    # lane/sublane-friendly padded sizes; P chunked to bound per-step VMEM temporaries
    T_pad = _round_up(max(T, 1), 128)
    pk = min(2048, _round_up(P, 128))        # P-chunk width (grid axis "arbitrary")
    P_pad = _round_up(P, pk)
    tq = min(tq_max, _round_up(Q, 8))
    Q_pad = _round_up(Q, tq)

    def pad3(x, r, c):
        return jnp.pad(x, ((0, 0), (0, r), (0, c)))

    prob_p = pad3(prob_full, Q_pad - Q, 0).astype(jnp.bfloat16)
    onehot_ct = jnp.transpose(pad3(onehot, T_pad - T, 0), (0, 2, 1)).astype(jnp.bfloat16)
    sp_p = pad3(sp_row, Q_pad - Q, 0)
    sig_p = pad3(sig_row, Q_pad - Q, 0)
    tpsum_p = pad3(tp_sum, 0, T_pad - T)
    # zero-padded point columns are harmless: the matching padded tgt^T rows are zero,
    # and the per-query rowsums above were taken over the true P points only.
    out_pts_p = pad3(out_pts, Q_pad - Q, P_pad - P).astype(jnp.bfloat16)
    tgt_pts_t = jnp.transpose(pad3(tgt_pts, T_pad - T, P_pad - P),
                              (0, 2, 1)).astype(jnp.bfloat16)                    # [B, P_pad, T_pad]

    cost = _matcher_cost_pallas(prob_p, onehot_ct, sp_p, sig_p, tpsum_p,
                                out_pts_p, tgt_pts_t,
                                w_class=w_class, w_mask=w_mask, w_dice=w_dice,
                                num_points=P, tq=tq, pk=pk,
                                compute_dtype=compute_dtype,
                                vmem_limit_bytes=vmem_limit_bytes)
    return cost[:, :Q, :T]


# ----------------------------------------------------------------------------
# Host-side Hungarian assignment
# ----------------------------------------------------------------------------
def _lsa_bruteforce(C):
    # TODO(synk): the Hungarian linear_sum_assignment is a sequential combinatorial
    # algorithm with no clean Pallas equivalent; done host-side (exact brute force
    # over the smaller axis, valid only for the small synthetic shapes used here).
    n, m = C.shape
    best, best_cost = None, np.inf
    if n <= m:
        rows = np.arange(n)
        for perm in itertools.permutations(range(m), n):
            cost = C[rows, list(perm)].sum()
            if cost < best_cost:
                best_cost, best = cost, (rows.copy(), np.asarray(perm))
    else:
        cols = np.arange(m)
        for perm in itertools.permutations(range(n), m):
            cost = C[list(perm), cols].sum()
            if cost < best_cost:
                r = np.asarray(perm)
                order = np.argsort(r)
                best_cost, best = cost, (r[order], cols[order])
    if best is None:
        return np.zeros((0,), np.int64), np.zeros((0,), np.int64)
    return best


def linear_sum_assignment_with_inf(cost_matrix):
    cost_matrix = np.asarray(cost_matrix, dtype=np.float64).copy()
    min_inf = np.isneginf(cost_matrix).any()
    max_inf = np.isposinf(cost_matrix).any()
    if min_inf and max_inf:
        raise ValueError("matrix contains both inf and -inf")
    if min_inf or max_inf:
        values = cost_matrix[~np.isinf(cost_matrix)]
        min_v, max_v = values.min(), values.max()
        m = min(cost_matrix.shape)
        positive = m * (max_v - min_v + np.abs(max_v) + np.abs(min_v) + 1)
        if max_inf:
            place_holder = max_v + (m - 1) * (max_v - min_v) + positive
        else:
            place_holder = min_v + (m - 1) * (min_v - max_v) - positive
        cost_matrix[np.isinf(cost_matrix)] = place_holder
    return _lsa_bruteforce(cost_matrix)


class HungarianMatcherPallas:
    """JAX/Pallas port of openvis.ov2seg.HungarianMatcher."""

    def __init__(self, cost_object=1.0, cost_class=1.0, cost_mask=1.0,
                 cost_dice=1.0, num_points=0):
        assert cost_object != 0 or cost_class != 0 or cost_mask != 0 or cost_dice != 0, \
            "all costs cant be 0"
        self.cost_object = cost_object   # NOTE: unused by forward, matching the reference
        self.cost_class = cost_class
        self.cost_mask = cost_mask
        self.cost_dice = cost_dice
        self.num_points = num_points
        tq_max, compute_dtype, vmem_limit = _device_tuning()
        self._cost_fn = jax.jit(functools.partial(
            _prep_and_cost, w_class=float(cost_class), w_mask=float(cost_mask),
            w_dice=float(cost_dice), tq_max=tq_max, compute_dtype=compute_dtype,
            vmem_limit_bytes=vmem_limit))

    def compute_cost_matrices(self, outputs, targets, rng_key):
        pred_logits = outputs["pred_logits"]            # [B, Q, C]
        obj_logits = outputs["pred_object_logits"]      # [B, Q, 2]
        pred_masks = outputs["pred_masks"]              # [B, Q, H, W]
        B, Q = pred_logits.shape[:2]
        P = self.num_points
        coords = jax.random.uniform(rng_key, (B, P, 2), jnp.float32)   # ~ torch.rand

        Ts = [int(np.shape(t["labels"])[0]) for t in targets]
        HWs = [tuple(np.shape(t["masks"])[-2:]) for t in targets]
        if len(set(Ts)) == 1 and len(set(HWs)) == 1 and Ts[0] > 0:
            tgt_masks = jnp.stack([t["masks"] for t in targets]).astype(jnp.float32)
            tgt_labels = jnp.stack([t["labels"] for t in targets]).astype(jnp.int32)
            Cmat = self._cost_fn(pred_logits, obj_logits, pred_masks,
                                 tgt_masks, tgt_labels, coords)
            Cnp = np.asarray(jax.block_until_ready(Cmat))
            return [Cnp[b] for b in range(B)]

        # ragged / empty targets: reuse the same batched path per image (B = 1)
        out = []
        for b in range(B):
            if Ts[b] == 0:
                out.append(np.zeros((Q, 0), np.float32))
                continue
            Cb = self._cost_fn(pred_logits[b:b + 1], obj_logits[b:b + 1],
                               pred_masks[b:b + 1],
                               jnp.asarray(targets[b]["masks"])[None].astype(jnp.float32),
                               jnp.asarray(targets[b]["labels"])[None].astype(jnp.int32),
                               coords[b:b + 1])
            out.append(np.asarray(jax.block_until_ready(Cb))[0])
        return out

    def __call__(self, outputs, targets, rng_key):
        cost = self.compute_cost_matrices(outputs, targets, rng_key)
        indices = [linear_sum_assignment_with_inf(c) for c in cost]
        return [(jnp.asarray(i, jnp.int32), jnp.asarray(j, jnp.int32))
                for i, j in indices]


# ----------------------------------------------------------------------------
# Pure-JAX f32 reference of the PyTorch cost formulation (for verification)
# ----------------------------------------------------------------------------
def _reference_cost(pred_logits, obj_logits, out_pts, tgt_pts, labels,
                    w_class, w_mask, w_dice):
    C = pred_logits.shape[-1]
    cls_sig = jax.nn.sigmoid(pred_logits[..., :-1])
    obj_prob = jax.nn.softmax(obj_logits, axis=-1)
    out_prob = jnp.concatenate(
        [jnp.sqrt(cls_sig * obj_prob[..., 0:1]), obj_prob[..., 1:2]], axis=-1)
    onehot = jax.nn.one_hot(labels, C, dtype=jnp.float32)
    cost_class = -jnp.einsum("bqc,btc->bqt", out_prob, onehot)

    x = out_pts
    P = x.shape[-1]
    pos = jnp.maximum(-x, 0.0) + jnp.log1p(jnp.exp(-jnp.abs(x)))   # BCE(logits, 1)
    neg = jnp.maximum(x, 0.0) + jnp.log1p(jnp.exp(-jnp.abs(x)))    # BCE(logits, 0)
    cost_mask = (jnp.einsum("bqp,btp->bqt", pos, tgt_pts)
                 + jnp.einsum("bqp,btp->bqt", neg, 1.0 - tgt_pts)) / P

    sig = jax.nn.sigmoid(x)
    numer = 2.0 * jnp.einsum("bqp,btp->bqt", sig, tgt_pts)
    denom = sig.sum(-1)[:, :, None] + tgt_pts.sum(-1)[:, None, :]
    cost_dice = 1.0 - (numer + 1.0) / (denom + 1.0)
    return w_mask * cost_mask + w_class * cost_class + w_dice * cost_dice


# ----------------------------------------------------------------------------
if __name__ == "__main__":
    B, Q, C = 2, 8, 5      # batch, num_queries, num_classes (last col = "no object")
    T = 4                  # ground-truth objects per image
    H = W = 16
    P = 128                # num_points

    key = jax.random.PRNGKey(0)
    k1, k2, k3, k4, k5 = jax.random.split(key, 5)

    pred_logits = jax.random.normal(k1, (B, Q, C), jnp.float32)
    pred_object_logits = jax.random.normal(k2, (B, Q, 2), jnp.float32)
    pred_masks = jax.random.normal(k3, (B, Q, H, W), jnp.float32)

    targets = []
    for b in range(B):
        kb = jax.random.fold_in(k4, b)
        labels = jax.random.randint(jax.random.fold_in(kb, 0), (T,), 0, C - 1)
        masks = (jax.random.uniform(jax.random.fold_in(kb, 1), (T, H, W)) > 0.5
                 ).astype(jnp.float32)
        targets.append({"labels": labels, "masks": masks})

    outputs = {"pred_logits": pred_logits,
               "pred_object_logits": pred_object_logits,
               "pred_masks": pred_masks}

    matcher = HungarianMatcherPallas(cost_object=1.0, cost_class=1.0,
                                     cost_mask=1.0, cost_dice=1.0, num_points=P)

    # --- verify the Pallas cost matrices against a pure-JAX f32 reference
    #     (loose tolerance: point tensors are staged to the kernel in bf16)
    cost_list = matcher.compute_cost_matrices(outputs, targets, rng_key=k5)
    coords = jax.random.uniform(k5, (B, P, 2), jnp.float32)
    out_pts = jax.vmap(point_sample)(pred_masks, coords)
    tgt_masks = jnp.stack([t["masks"] for t in targets])
    tgt_pts = jax.vmap(point_sample)(tgt_masks, coords)
    labels_all = jnp.stack([t["labels"] for t in targets])
    C_ref = _reference_cost(pred_logits, pred_object_logits, out_pts, tgt_pts,
                            labels_all, 1.0, 1.0, 1.0)
    np.testing.assert_allclose(np.stack(cost_list), np.asarray(C_ref),
                               rtol=5e-2, atol=5e-2)

    # --- full matcher (Hungarian assignment on host)
    indices = matcher(outputs, targets, rng_key=k5)
    for i, j in indices:
        jax.block_until_ready(i)
        jax.block_until_ready(j)
        assert i.shape[0] == j.shape[0] == min(Q, T)

    print("KERNEL_OK")
</pallas_src>

<mosaic_0001>
module attributes {stable_mosaic.version = 11 : i64} {
  func.func @_matcher_cost_kernel(%arg0: i32, %arg1: i32, %arg2: i32, %arg3: memref<1x8x5xbf16, #tpu.memory_space<vmem>>, %arg4: memref<1x5x128xbf16, #tpu.memory_space<vmem>>, %arg5: memref<1x8x1xf32, #tpu.memory_space<vmem>>, %arg6: memref<1x8x1xf32, #tpu.memory_space<vmem>>, %arg7: memref<1x1x128xf32, #tpu.memory_space<vmem>>, %arg8: memref<1x8x128xbf16, #tpu.memory_space<vmem>>, %arg9: memref<1x128x128xbf16, #tpu.memory_space<vmem>>, %arg10: memref<1x8x128xf32, #tpu.memory_space<vmem>>, %arg11: memref<8x128xf32, #tpu.memory_space<vmem>>) attributes {dimension_semantics = [#tpu.dimension_semantics<parallel>, #tpu.dimension_semantics<parallel>, #tpu.dimension_semantics<arbitrary>], iteration_bounds = array<i64: 2, 1, 1>, scalar_prefetch = 0 : i64, scratch_operands = 1 : i64, tpu.core_type = #tpu.core_type<tc>, window_params = [{transform_indices = @transform_0, window_bounds = array<i64: 1, 8, 5>}, {transform_indices = @transform_1, window_bounds = array<i64: 1, 5, 128>}, {transform_indices = @transform_2, window_bounds = array<i64: 1, 8, 1>}, {transform_indices = @transform_3, window_bounds = array<i64: 1, 8, 1>}, {transform_indices = @transform_4, window_bounds = array<i64: 1, 1, 128>}, {transform_indices = @transform_5, window_bounds = array<i64: 1, 8, 128>}, {transform_indices = @transform_6, window_bounds = array<i64: 1, 128, 128>}, {transform_indices = @transform_7, window_bounds = array<i64: 1, 8, 128>}]} {
    %c0_i32 = arith.constant 0 : i32
    %0 = arith.cmpi eq, %arg2, %c0_i32 : i32
    %1 = arith.extui %0 : i1 to i32
    %c0_i32_0 = arith.constant 0 : i32
    %2 = arith.cmpi ne, %1, %c0_i32_0 : i32
    scf.if %2 {
      %c0_23 = arith.constant 0 : index
      %c0_24 = arith.constant 0 : index
      %c0_25 = arith.constant 0 : index
      %30 = vector.load %arg3[%c0_23, %c0_24, %c0_25] : memref<1x8x5xbf16, #tpu.memory_space<vmem>>, vector<1x8x5xbf16>
      %31 = vector.shape_cast %30 : vector<1x8x5xbf16> to vector<8x5xbf16>
      %c0_26 = arith.constant 0 : index
      %c0_27 = arith.constant 0 : index
      %c0_28 = arith.constant 0 : index
      %32 = vector.load %arg4[%c0_26, %c0_27, %c0_28] : memref<1x5x128xbf16, #tpu.memory_space<vmem>>, vector<1x5x128xbf16>
      %33 = vector.shape_cast %32 : vector<1x5x128xbf16> to vector<5x128xbf16>
      %cst_29 = arith.constant dense<0.000000e+00> : vector<8x128xf32>
      %34 = tpu.matmul %31, %33, %cst_29 {dimension_numbers = #tpu.dot_dimension_numbers<[1], [0], [0], [1], [0, 0, 1, 1], [], []>} : vector<8x5xbf16>, vector<5x128xbf16>, vector<8x128xf32> -> vector<8x128xf32>
      %cst_30 = arith.constant -1.000000e+00 : f32
      %35 = vector.broadcast %cst_30 : f32 to vector<8x128xf32>
      %36 = arith.mulf %35, %34 : vector<8x128xf32>
      %c0_31 = arith.constant 0 : index
      %c0_32 = arith.constant 0 : index
      %c0_33 = arith.constant 0 : index
      %37 = vector.load %arg5[%c0_31, %c0_32, %c0_33] : memref<1x8x1xf32, #tpu.memory_space<vmem>>, vector<1x8x1xf32>
      %38 = vector.shape_cast %37 : vector<1x8x1xf32> to vector<8x1xf32>
      %cst_34 = arith.constant 7.812500e-03 : f32
      %39 = vector.broadcast %cst_34 : f32 to vector<8x1xf32>
      %40 = arith.mulf %39, %38 : vector<8x1xf32>
      %41 = vector.broadcast %40 : vector<8x1xf32> to vector<8x128xf32>
      %42 = arith.addf %36, %41 : vector<8x128xf32>
      %c0_35 = arith.constant 0 : index
      %c0_36 = arith.constant 0 : index
      %c0_37 = arith.constant 0 : index
      %43 = vector.load %arg10[%c0_35, %c0_36, %c0_37] : memref<1x8x128xf32, #tpu.memory_space<vmem>>, vector<1x8x128xf32>
      %44 = vector.shape_cast %43 : vector<1x8x128xf32> to vector<8x128xf32>
      %45 = vector.shape_cast %42 : vector<8x128xf32> to vector<1x8x128xf32>
      tpu.vector_store %arg10[%c0_35, %c0_36, %c0_37], %45 {strides = array<i32>} : memref<1x8x128xf32, #tpu.memory_space<vmem>>, vector<1x8x128xf32>,
      %cst_38 = arith.constant 0.000000e+00 : f32
      %46 = vector.broadcast %cst_38 : f32 to vector<8x128xf32>
      %c0_39 = arith.constant 0 : index
      %c0_40 = arith.constant 0 : index
      %47 = vector.load %arg11[%c0_39, %c0_40] : memref<8x128xf32, #tpu.memory_space<vmem>>, vector<8x128xf32>
      tpu.vector_store %arg11[%c0_39, %c0_40], %46 {strides = array<i32>} : memref<8x128xf32, #tpu.memory_space<vmem>>, vector<8x128xf32>,
    } else {
    }
    %c0 = arith.constant 0 : index
    %c0_1 = arith.constant 0 : index
    %c0_2 = arith.constant 0 : index
    %3 = vector.load %arg8[%c0, %c0_1, %c0_2] : memref<1x8x128xbf16, #tpu.memory_space<vmem>>, vector<1x8x128xbf16>
    %4 = vector.shape_cast %3 : vector<1x8x128xbf16> to vector<8x128xbf16>
    %c0_3 = arith.constant 0 : index
    %c0_4 = arith.constant 0 : index
    %c0_5 = arith.constant 0 : index
    %5 = vector.load %arg9[%c0_3, %c0_4, %c0_5] : memref<1x128x128xbf16, #tpu.memory_space<vmem>>, vector<1x128x128xbf16>
    %6 = vector.shape_cast %5 : vector<1x128x128xbf16> to vector<128x128xbf16>
    %cst = arith.constant dense<0.000000e+00> : vector<8x128xf32>
    %7 = tpu.matmul %4, %6, %cst {dimension_numbers = #tpu.dot_dimension_numbers<[1], [0], [0], [1], [0, 0, 1, 1], [], []>} : vector<8x128xbf16>, vector<128x128xbf16>, vector<8x128xf32> -> vector<8x128xf32>
    %c0_6 = arith.constant 0 : index
    %c0_7 = arith.constant 0 : index
    %c0_8 = arith.constant 0 : index
    %8 = vector.load %arg10[%c0_6, %c0_7, %c0_8] : memref<1x8x128xf32, #tpu.memory_space<vmem>>, vector<1x8x128xf32>
    %9 = vector.shape_cast %8 : vector<1x8x128xf32> to vector<8x128xf32>
    %cst_9 = arith.constant -7.812500e-03 : f32
    %10 = vector.broadcast %cst_9 : f32 to vector<8x128xf32>
    %11 = arith.mulf %10, %7 : vector<8x128xf32>
    %12 = arith.addf %9, %11 : vector<8x128xf32>
    %c0_10 = arith.constant 0 : index
    %c0_11 = arith.constant 0 : index
    %c0_12 = arith.constant 0 : index
    %13 = vector.load %arg10[%c0_10, %c0_11, %c0_12] : memref<1x8x128xf32, #tpu.memory_space<vmem>>, vector<1x8x128xf32>
    %14 = vector.shape_cast %13 : vector<1x8x128xf32> to vector<8x128xf32>
    %15 = vector.shape_cast %12 : vector<8x128xf32> to vector<1x8x128xf32>
    tpu.vector_store %arg10[%c0_10, %c0_11, %c0_12], %15 {strides = array<i32>} : memref<1x8x128xf32, #tpu.memory_space<vmem>>, vector<1x8x128xf32>,
    %cst_13 = arith.constant 5.000000e-01 : bf16
    %16 = vector.broadcast %cst_13 : bf16 to vector<8x128xbf16>
    %17 = arith.mulf %4, %16 : vector<8x128xbf16>
    %18 = math.tanh %17 : vector<8x128xbf16>
    %cst_14 = arith.constant 5.000000e-01 : bf16
    %19 = vector.broadcast %cst_14 : bf16 to vector<8x128xbf16>
    %20 = arith.mulf %18, %19 : vector<8x128xbf16>
    %cst_15 = arith.constant 5.000000e-01 : bf16
    %21 = vector.broadcast %cst_15 : bf16 to vector<8x128xbf16>
    %22 = arith.addf %20, %21 : vector<8x128xbf16>
    %c0_16 = arith.constant 0 : index
    %c0_17 = arith.constant 0 : index
    %23 = vector.load %arg11[%c0_16, %c0_17] : memref<8x128xf32, #tpu.memory_space<vmem>>, vector<8x128xf32>
    %cst_18 = arith.constant dense<0.000000e+00> : vector<8x128xf32>
    %24 = tpu.matmul %22, %6, %cst_18 {dimension_numbers = #tpu.dot_dimension_numbers<[1], [0], [0], [1], [0, 0, 1, 1], [], []>} : vector<8x128xbf16>, vector<128x128xbf16>, vector<8x128xf32> -> vector<8x128xf32>
    %25 = arith.addf %23, %24 : vector<8x128xf32>
    %c0_19 = arith.constant 0 : index
    %c0_20 = arith.constant 0 : index
    %26 = vector.load %arg11[%c0_19, %c0_20] : memref<8x128xf32, #tpu.memory_space<vmem>>, vector<8x128xf32>
    tpu.vector_store %arg11[%c0_19, %c0_20], %25 {strides = array<i32>} : memref<8x128xf32, #tpu.memory_space<vmem>>, vector<8x128xf32>,
    %c0_i32_21 = arith.constant 0 : i32
    %27 = arith.cmpi eq, %arg2, %c0_i32_21 : i32
    %28 = arith.extui %27 : i1 to i32
    %c0_i32_22 = arith.constant 0 : i32
    %29 = arith.cmpi ne, %28, %c0_i32_22 : i32
    scf.if %29 {
      %c0_23 = arith.constant 0 : index
      %c0_24 = arith.constant 0 : index
      %30 = vector.load %arg11[%c0_23, %c0_24] : memref<8x128xf32, #tpu.memory_space<vmem>>, vector<8x128xf32>
      %cst_25 = arith.constant 2.000000e+00 : f32
      %31 = vector.broadcast %cst_25 : f32 to vector<8x128xf32>
      %32 = arith.mulf %31, %30 : vector<8x128xf32>
      %cst_26 = arith.constant 1.000000e+00 : f32
      %33 = vector.broadcast %cst_26 : f32 to vector<8x128xf32>
      %34 = arith.addf %32, %33 : vector<8x128xf32>
      %c0_27 = arith.constant 0 : index
      %c0_28 = arith.constant 0 : index
      %c0_29 = arith.constant 0 : index
      %35 = vector.load %arg6[%c0_27, %c0_28, %c0_29] : memref<1x8x1xf32, #tpu.memory_space<vmem>>, vector<1x8x1xf32>
      %36 = vector.shape_cast %35 : vector<1x8x1xf32> to vector<8x1xf32>
      %c0_30 = arith.constant 0 : index
      %c0_31 = arith.constant 0 : index
      %c0_32 = arith.constant 0 : index
      %37 = vector.load %arg7[%c0_30, %c0_31, %c0_32] : memref<1x1x128xf32, #tpu.memory_space<vmem>>, vector<1x1x128xf32>
      %38 = vector.shape_cast %37 : vector<1x1x128xf32> to vector<1x128xf32>
      %39 = vector.broadcast %36 : vector<8x1xf32> to vector<8x128xf32>
      %40 = vector.broadcast %38 : vector<1x128xf32> to vector<8x128xf32>
      %41 = arith.addf %39, %40 : vector<8x128xf32>
      %cst_33 = arith.constant 1.000000e+00 : f32
      %42 = vector.broadcast %cst_33 : f32 to vector<8x128xf32>
      %43 = arith.addf %41, %42 : vector<8x128xf32>
      %c0_34 = arith.constant 0 : index
      %c0_35 = arith.constant 0 : index
      %c0_36 = arith.constant 0 : index
      %44 = vector.load %arg10[%c0_34, %c0_35, %c0_36] : memref<1x8x128xf32, #tpu.memory_space<vmem>>, vector<1x8x128xf32>
      %45 = vector.shape_cast %44 : vector<1x8x128xf32> to vector<8x128xf32>
      %46 = arith.divf %34, %43 : vector<8x128xf32>
      %cst_37 = arith.constant 1.000000e+00 : f32
      %47 = vector.broadcast %cst_37 : f32 to vector<8x128xf32>
      %48 = arith.subf %47, %46 : vector<8x128xf32>
      %cst_38 = arith.constant 1.000000e+00 : f32
      %49 = vector.broadcast %cst_38 : f32 to vector<8x128xf32>
      %50 = arith.mulf %49, %48 : vector<8x128xf32>
      %51 = arith.addf %45, %50 : vector<8x128xf32>
      %c0_39 = arith.constant 0 : index
      %c0_40 = arith.constant 0 : index
      %c0_41 = arith.constant 0 : index
      %52 = vector.load %arg10[%c0_39, %c0_40, %c0_41] : memref<1x8x128xf32, #tpu.memory_space<vmem>>, vector<1x8x128xf32>
      %53 = vector.shape_cast %52 : vector<1x8x128xf32> to vector<8x128xf32>
      %54 = vector.shape_cast %51 : vector<8x128xf32> to vector<1x8x128xf32>
      tpu.vector_store %arg10[%c0_39, %c0_40, %c0_41], %54 {strides = array<i32>} : memref<1x8x128xf32, #tpu.memory_space<vmem>>, vector<1x8x128xf32>,
    } else {
    }
    return
  }
  func.func @transform_0(%arg0: i32, %arg1: i32, %arg2: i32) -> (i32, i32, i32) {
    %c0_i32 = arith.constant 0 : i32
    %c0_i32_0 = arith.constant 0 : i32
    return %arg0, %arg1, %c0_i32 : i32, i32, i32
  }
  func.func @transform_1(%arg0: i32, %arg1: i32, %arg2: i32) -> (i32, i32, i32) {
    %c0_i32 = arith.constant 0 : i32
    %c0_i32_0 = arith.constant 0 : i32
    %c0_i32_1 = arith.constant 0 : i32
    return %arg0, %c0_i32, %c0_i32_0 : i32, i32, i32
  }
  func.func @transform_2(%arg0: i32, %arg1: i32, %arg2: i32) -> (i32, i32, i32) {
    %c0_i32 = arith.constant 0 : i32
    %c0_i32_0 = arith.constant 0 : i32
    return %arg0, %arg1, %c0_i32 : i32, i32, i32
  }
  func.func @transform_3(%arg0: i32, %arg1: i32, %arg2: i32) -> (i32, i32, i32) {
    %c0_i32 = arith.constant 0 : i32
    %c0_i32_0 = arith.constant 0 : i32
    return %arg0, %arg1, %c0_i32 : i32, i32, i32
  }
  func.func @transform_4(%arg0: i32, %arg1: i32, %arg2: i32) -> (i32, i32, i32) {
    %c0_i32 = arith.constant 0 : i32
    %c0_i32_0 = arith.constant 0 : i32
    %c0_i32_1 = arith.constant 0 : i32
    return %arg0, %c0_i32, %c0_i32_0 : i32, i32, i32
  }
  func.func @transform_5(%arg0: i32, %arg1: i32, %arg2: i32) -> (i32, i32, i32) {
    %c0_i32 = arith.constant 0 : i32
    return %arg0, %arg1, %arg2 : i32, i32, i32
  }
  func.func @transform_6(%arg0: i32, %arg1: i32, %arg2: i32) -> (i32, i32, i32) {
    %c0_i32 = arith.constant 0 : i32
    %c0_i32_0 = arith.constant 0 : i32
    return %arg0, %arg2, %c0_i32 : i32, i32, i32
  }
  func.func @transform_7(%arg0: i32, %arg1: i32, %arg2: i32) -> (i32, i32, i32) {
    %c0_i32 = arith.constant 0 : i32
    %c0_i32_0 = arith.constant 0 : i32
    return %arg0, %arg1, %c0_i32 : i32, i32, i32
  }
}

</mosaic_0001>

<llo_original>
// kernel: _prep_and_cost.1
$region0: #{_prep_and_cost.1}
  #allocation0 [shape = 'u32[]', space=smem, size = 0x4, offset = 0x4, fixed_abs, tag = 'smem constant byte address 0x4 - core index']
  #allocation1 [shape = 'u32[144,128]{1,0:T(1,128)}', space=vmem, size = 0x12000, scoped, tag = 'internal scratch']
  #allocation2 [shape = 'f32[8,128]{1,0:T(8,128)}', space=vmem, size = 0x1000, scoped, tag = 'scratch operand']
  %s0 = inlined_call_operand.vmem [shape: bf16[2,8,5], index: 0, kind: input, shape index: {}]
  %s1 = inlined_call_operand.vmem [shape: bf16[2,5,128], index: 1, kind: input, shape index: {}]
  %s2 = inlined_call_operand.vmem [shape: f32[2,8,1], index: 2, kind: input, shape index: {}]
  %s3 = inlined_call_operand.vmem [shape: f32[2,8,1], index: 3, kind: input, shape index: {}]
  %s4 = inlined_call_operand.vmem [shape: f32[2,1,128], index: 4, kind: input, shape index: {}]
  %s5 = inlined_call_operand.vmem [shape: bf16[2,8,128], index: 5, kind: input, shape index: {}]
  %s6 = inlined_call_operand.vmem [shape: bf16[2,128,128], index: 6, kind: input, shape index: {}]
  %s7 = inlined_call_operand.vmem [shape: f32[2,8,128], index: 7, kind: output, shape index: {}]
  %s8 = sld [smem:[#allocation0]]
  $region69: #{_prep_and_cost.1} parent=0
    _
  %s10 = ssub.s32 1, %s8
  %s11 = scalar_select 0, %s10, %s8
  loop: start=0, step=1, limit=4
  $region2: #{_prep_and_cost.1} parent=0 // loop_pre_header
    _
  $region3: #{_prep_and_cost.1} parent=0 // loop_header
    %s13 = sphi 0, %s17
    %p14 = scmp.ge.s32.totalorder %s13, 4
    %s20 = sphi 0, %s39
    %s21 = sphi 0, %s35
    %s22 = sphi 0, %s31
    %s23 = sphi 0, %s20
    %s24 = sphi 0, %s21
    %s25 = sphi 0, %s22
    %s26 = sphi 0, %s23
    %s27 = sphi 0, %s24
    %s28 = sphi 0, %s25
    %s44 = sphi 0, %s46
    %s47 = sphi 0, %s44
    %s48 = sphi 0, %s47
    %s64 = sphi 0, %s48
    %s70 = sphi 0, %s72
    %s73 = sphi 0, %s70
    %s74 = sphi 0, %s73
    %s90 = sphi 0, %s74
    %s98 = sphi 0, %s100
    %s101 = sphi 0, %s98
    %s102 = sphi 0, %s101
    %s118 = sphi 0, %s102
    %s126 = sphi 0, %s128
    %s129 = sphi 0, %s126
    %s130 = sphi 0, %s129
    %s146 = sphi 0, %s130
    %s152 = sphi 0, %s154
    %s155 = sphi 0, %s152
    %s156 = sphi 0, %s155
    %s172 = sphi 0, %s156
    %s182 = sphi 0, %s184
    %s185 = sphi 0, %s182
    %s186 = sphi 0, %s185
    %s202 = sphi 0, %s186
    %s210 = sphi 0, %s212
    %s213 = sphi 0, %s210
    %s214 = sphi 0, %s213
    %s230 = sphi 0, %s214
    %s238 = sphi 0, %s240
    %s241 = sphi 0, %s238
    %s242 = sphi 0, %s241
    %s258 = sphi 0, %s242
  $region4: #{_prep_and_cost.1} parent=0 // loop_header_branch
    %16 = sbr.rel (%p14) target = $region8
  $region5: #{_prep_and_cost.1} parent=0 // loop_body
    %s18 = ssub.s32 %s13, 1
    %s19 = ssub.s32 %s13, 2
    %s29 = sadd.s32 1, %s22
    %p30 = scmp.ge.s32.totalorder %s29, 1
    %s31 = scalar_select %p30, 0, %s29
    %s32 = sadd.s32 1, %s21
    %s33 = scalar_select %p30, %s32, %s21
    %p34 = scmp.ge.s32.totalorder %s33, 1
    %s35 = scalar_select %p34, 0, %s33
    %s36 = sadd.s32 1, %s20
    %s37 = scalar_select %p34, %s36, %s20
    %p38 = scmp.ge.s32.totalorder %s37, 2
    %s39 = scalar_select %p38, 0, %s37
    %s40 = ssub.s32 %s20, %s39
    %s41 = ssub.s32 %s21, %s35
    %s42 = sor.u32 %s40, %s41
    %p43 = scmp.eq.s32.totalorder %s42, 0
    %s45 = sadd.s32 %s44, 1
    %s46 = scalar_select %p43, %s44, %s45
    %p49 = pneg %p43
    %p50 = scmp.eq.s32.totalorder %s13, 1
    %p51 = por %p49, %p50
    %p52 = scmp.ne.s32.totalorder %s44, %s47
    %p53 = scmp.eq.s32.totalorder %s13, 0
    %p54 = por %p52, %p53
    %p55 = scmp.ne.s32.totalorder %s44, %s47
    %p56 = scmp.eq.s32.totalorder %s18, 1
    %p57 = por %p55, %p56
    %p58 = scmp.ne.s32.totalorder %s47, %s48
    %p59 = scmp.eq.s32.totalorder %s18, 0
    %p60 = por %p58, %p59
    %p61 = scmp.ne.s32.totalorder %s47, %s48
    %p62 = scmp.eq.s32.totalorder %s19, 1
    %p63 = por %p61, %p62
    %p65 = scmp.ne.s32.totalorder %s48, %s64
    %p66 = scmp.eq.s32.totalorder %s19, 0
    %p67 = por %p65, %p66
    %s68 = ssub.s32 %s20, %s39
    %p69 = scmp.eq.s32.totalorder %s68, 0
    %s71 = sadd.s32 %s70, 1
    %s72 = scalar_select %p69, %s70, %s71
    %p75 = pneg %p69
    %p76 = scmp.eq.s32.totalorder %s13, 1
    %p77 = por %p75, %p76
    %p78 = scmp.ne.s32.totalorder %s70, %s73
    %p79 = scmp.eq.s32.totalorder %s13, 0
    %p80 = por %p78, %p79
    %p81 = scmp.ne.s32.totalorder %s70, %s73
    %p82 = scmp.eq.s32.totalorder %s18, 1
    %p83 = por %p81, %p82
    %p84 = scmp.ne.s32.totalorder %s73, %s74
    %p85 = scmp.eq.s32.totalorder %s18, 0
    %p86 = por %p84, %p85
    %p87 = scmp.ne.s32.totalorder %s73, %s74
    %p88 = scmp.eq.s32.totalorder %s19, 1
    %p89 = por %p87, %p88
    %p91 = scmp.ne.s32.totalorder %s74, %s90
    %p92 = scmp.eq.s32.totalorder %s19, 0
    %p93 = por %p91, %p92
    %s94 = ssub.s32 %s20, %s39
    %s95 = ssub.s32 %s21, %s35
    %s96 = sor.u32 %s94, %s95
    %p97 = scmp.eq.s32.totalorder %s96, 0
    %s99 = sadd.s32 %s98, 1
    %s100 = scalar_select %p97, %s98, %s99
    %p103 = pneg %p97
    %p104 = scmp.eq.s32.totalorder %s13, 1
    %p105 = por %p103, %p104
    %p106 = scmp.ne.s32.totalorder %s98, %s101
    %p107 = scmp.eq.s32.totalorder %s13, 0
    %p108 = por %p106, %p107
    %p109 = scmp.ne.s32.totalorder %s98, %s101
    %p110 = scmp.eq.s32.totalorder %s18, 1
    %p111 = por %p109, %p110
    %p112 = scmp.ne.s32.totalorder %s101, %s102
    %p113 = scmp.eq.s32.totalorder %s18, 0
    %p114 = por %p112, %p113
    %p115 = scmp.ne.s32.totalorder %s101, %s102
    %p116 = scmp.eq.s32.totalorder %s19, 1
    %p117 = por %p115, %p116
    %p119 = scmp.ne.s32.totalorder %s102, %s118
    %p120 = scmp.eq.s32.totalorder %s19, 0
    %p121 = por %p119, %p120
    %s122 = ssub.s32 %s20, %s39
    %s123 = ssub.s32 %s21, %s35
    %s124 = sor.u32 %s122, %s123
    %p125 = scmp.eq.s32.totalorder %s124, 0
    %s127 = sadd.s32 %s126, 1
    %s128 = scalar_select %p125, %s126, %s127
    %p131 = pneg %p125
    %p132 = scmp.eq.s32.totalorder %s13, 1
    %p133 = por %p131, %p132
    %p134 = scmp.ne.s32.totalorder %s126, %s129
    %p135 = scmp.eq.s32.totalorder %s13, 0
    %p136 = por %p134, %p135
    %p137 = scmp.ne.s32.totalorder %s126, %s129
    %p138 = scmp.eq.s32.totalorder %s18, 1
    %p139 = por %p137, %p138
    %p140 = scmp.ne.s32.totalorder %s129, %s130
    %p141 = scmp.eq.s32.totalorder %s18, 0
    %p142 = por %p140, %p141
    %p143 = scmp.ne.s32.totalorder %s129, %s130
    %p144 = scmp.eq.s32.totalorder %s19, 1
    %p145 = por %p143, %p144
    %p147 = scmp.ne.s32.totalorder %s130, %s146
    %p148 = scmp.eq.s32.totalorder %s19, 0
    %p149 = por %p147, %p148
    %s150 = ssub.s32 %s20, %s39
    %p151 = scmp.eq.s32.totalorder %s150, 0
    %s153 = sadd.s32 %s152, 1
    %s154 = scalar_select %p151, %s152, %s153
    %p157 = pneg %p151
    %p158 = scmp.eq.s32.totalorder %s13, 1
    %p159 = por %p157, %p158
    %p160 = scmp.ne.s32.totalorder %s152, %s155
    %p161 = scmp.eq.s32.totalorder %s13, 0
    %p162 = por %p160, %p161
    %p163 = scmp.ne.s32.totalorder %s152, %s155
    %p164 = scmp.eq.s32.totalorder %s18, 1
    %p165 = por %p163, %p164
    %p166 = scmp.ne.s32.totalorder %s155, %s156
    %p167 = scmp.eq.s32.totalorder %s18, 0
    %p168 = por %p166, %p167
    %p169 = scmp.ne.s32.totalorder %s155, %s156
    %p170 = scmp.eq.s32.totalorder %s19, 1
    %p171 = por %p169, %p170
    %p173 = scmp.ne.s32.totalorder %s156, %s172
    %p174 = scmp.eq.s32.totalorder %s19, 0
    %p175 = por %p173, %p174
    %s176 = ssub.s32 %s20, %s39
    %s177 = ssub.s32 %s21, %s35
    %s178 = sor.u32 %s176, %s177
    %s179 = ssub.s32 %s22, %s31
    %s180 = sor.u32 %s178, %s179
    %p181 = scmp.eq.s32.totalorder %s180, 0
    %s183 = sadd.s32 %s182, 1
    %s184 = scalar_select %p181, %s182, %s183
    %p187 = pneg %p181
    %p188 = scmp.eq.s32.totalorder %s13, 1
    %p189 = por %p187, %p188
    %p190 = scmp.ne.s32.totalorder %s182, %s185
    %p191 = scmp.eq.s32.totalorder %s13, 0
    %p192 = por %p190, %p191
    %p193 = scmp.ne.s32.totalorder %s182, %s185
    %p194 = scmp.eq.s32.totalorder %s18, 1
    %p195 = por %p193, %p194
    %p196 = scmp.ne.s32.totalorder %s185, %s186
    %p197 = scmp.eq.s32.totalorder %s18, 0
    %p198 = por %p196, %p197
    %p199 = scmp.ne.s32.totalorder %s185, %s186
    %p200 = scmp.eq.s32.totalorder %s19, 1
    %p201 = por %p199, %p200
    %p203 = scmp.ne.s32.totalorder %s186, %s202
    %p204 = scmp.eq.s32.totalorder %s19, 0
    %p205 = por %p203, %p204
    %s206 = ssub.s32 %s20, %s39
    %s207 = ssub.s32 %s22, %s31
    %s208 = sor.u32 %s206, %s207
    %p209 = scmp.eq.s32.totalorder %s208, 0
    %s211 = sadd.s32 %s210, 1
    %s212 = scalar_select %p209, %s210, %s211
    %p215 = pneg %p209
    %p216 = scmp.eq.s32.totalorder %s13, 1
    %p217 = por %p215, %p216
    %p218 = scmp.ne.s32.totalorder %s210, %s213
    %p219 = scmp.eq.s32.totalorder %s13, 0
    %p220 = por %p218, %p219
    %p221 = scmp.ne.s32.totalorder %s210, %s213
    %p222 = scmp.eq.s32.totalorder %s18, 1
    %p223 = por %p221, %p222
    %p224 = scmp.ne.s32.totalorder %s213, %s214
    %p225 = scmp.eq.s32.totalorder %s18, 0
    %p226 = por %p224, %p225
    %p227 = scmp.ne.s32.totalorder %s213, %s214
    %p228 = scmp.eq.s32.totalorder %s19, 1
    %p229 = por %p227, %p228
    %p231 = scmp.ne.s32.totalorder %s214, %s230
    %p232 = scmp.eq.s32.totalorder %s19, 0
    %p233 = por %p231, %p232
    %s234 = ssub.s32 %s20, %s39
    %s235 = ssub.s32 %s21, %s35
    %s236 = sor.u32 %s234, %s235
    %p237 = scmp.eq.s32.totalorder %s236, 0
    %s239 = sadd.s32 %s238, 1
    %s240 = scalar_select %p237, %s238, %s239
    %p243 = pneg %p237
    %p244 = scmp.eq.s32.totalorder %s13, 1
    %p245 = por %p243, %p244
    %p246 = scmp.ne.s32.totalorder %s238, %s241
    %p247 = scmp.eq.s32.totalorder %s13, 0
    %p248 = por %p246, %p247
    %p249 = scmp.ne.s32.totalorder %s238, %s241
    %p250 = scmp.eq.s32.totalorder %s18, 1
    %p251 = por %p249, %p250
    %p252 = scmp.ne.s32.totalorder %s241, %s242
    %p253 = scmp.eq.s32.totalorder %s18, 0
    %p254 = por %p252, %p253
    %p255 = scmp.ne.s32.totalorder %s241, %s242
    %p256 = scmp.eq.s32.totalorder %s19, 1
    %p257 = por %p255, %p256
    %p259 = scmp.ne.s32.totalorder %s242, %s258
    %p260 = scmp.eq.s32.totalorder %s19, 0
    %p261 = por %p259, %p260
    %p262 = scmp.le.s32.totalorder 1, %s13
    %p263 = scmp.lt.s32.totalorder %s13, 3
    %p264 = pnand %p262, %p263
    %p265 = pneg %p264
    // Predicated region
    $region9: #{_prep_and_cost.1} parent=5 // pred_check
      _
    $region10: #{_prep_and_cost.1} parent=5 // pred_check_branch
      %267 = sbr.rel (%p264) target = $region12
    $region11: #{_prep_and_cost.1} parent=5 // pred_region
      %s268 = ssub.s32 %s13, 1
    $region12: #{_prep_and_cost.1} parent=5 // pred_fallthru
      _
    %p269 = scmp.lt.s32.totalorder %s13, 2
    // Predicated region
    $region13: #{_prep_and_cost.1} parent=5 // pred_check
      %p270 = pneg %p269
    $region14: #{_prep_and_cost.1} parent=5 // pred_check_branch
      %272 = sbr.rel (%p270) target = $region16
    $region15: #{_prep_and_cost.1} parent=5 // pred_region
      // Predicated region
      $region17: #{_prep_and_cost.1} parent=15 // pred_check
        %p273 = pneg %p54
      $region18: #{_prep_and_cost.1} parent=15 // pred_check_branch
        %275 = sbr.rel (%p273) target = $region20
      $region19: #{_prep_and_cost.1} parent=15 // pred_region
        %p276 = scmp.lt.s32.totalorder %s20, 1
        %s277 = scalar_select %p276, %s20, 1
        %p278 = scmp.lt.s32.totalorder %s21, 0
        %s279 = scalar_select %p278, %s21, 0
        %s280 = sadd.s32 %s279, %s277
        %s281 = smul.addr %s280, 4
        %s282 = scalar_lea.vmem %s0, %s281
      $region20: #{_prep_and_cost.1} parent=15 // pred_fallthru
        _
      // Predicated region
      $region21: #{_prep_and_cost.1} parent=15 // pred_check
        %p283 = pneg %p80
      $region22: #{_prep_and_cost.1} parent=15 // pred_check_branch
        %285 = sbr.rel (%p283) target = $region24
      $region23: #{_prep_and_cost.1} parent=15 // pred_region
        %p286 = scmp.lt.s32.totalorder %s20, 1
        %s287 = scalar_select %p286, %s20, 1
        %s288 = smul.addr %s287, 4
        %s289 = scalar_lea.vmem %s1, %s288
      $region24: #{_prep_and_cost.1} parent=15 // pred_fallthru
        _
      // Predicated region
      $region25: #{_prep_and_cost.1} parent=15 // pred_check
        %p290 = pneg %p108
      $region26: #{_prep_and_cost.1} parent=15 // pred_check_branch
        %292 = sbr.rel (%p290) target = $region28
      $region27: #{_prep_and_cost.1} parent=15 // pred_region
        %p293 = scmp.lt.s32.totalorder %s20, 1
        %s294 = scalar_select %p293, %s20, 1
        %p295 = scmp.lt.s32.totalorder %s21, 0
        %s296 = scalar_select %p295, %s21, 0
        %s297 = sadd.s32 %s296, %s294
        %s298 = smul.addr %s297, 8
        %s299 = scalar_lea.vmem %s2, %s298
      $region28: #{_prep_and_cost.1} parent=15 // pred_fallthru
        _
      // Predicated region
      $region29: #{_prep_and_cost.1} parent=15 // pred_check
        %p300 = pneg %p136
      $region30: #{_prep_and_cost.1} parent=15 // pred_check_branch
        %302 = sbr.rel (%p300) target = $region32
      $region31: #{_prep_and_cost.1} parent=15 // pred_region
        %p303 = scmp.lt.s32.totalorder %s20, 1
        %s304 = scalar_select %p303, %s20, 1
        %p305 = scmp.lt.s32.totalorder %s21, 0
        %s306 = scalar_select %p305, %s21, 0
        %s307 = sadd.s32 %s306, %s304
        %s308 = smul.addr %s307, 8
        %s309 = scalar_lea.vmem %s3, %s308
      $region32: #{_prep_and_cost.1} parent=15 // pred_fallthru
        _
      // Predicated region
      $region33: #{_prep_and_cost.1} parent=15 // pred_check
        %p310 = pneg %p162
      $region34: #{_prep_and_cost.1} parent=15 // pred_check_branch
        %312 = sbr.rel (%p310) target = $region36
      $region35: #{_prep_and_cost.1} parent=15 // pred_region
        %p313 = scmp.lt.s32.totalorder %s20, 1
        %s314 = scalar_select %p313, %s20, 1
        %s315 = scalar_lea.vmem %s4, %s314
      $region36: #{_prep_and_cost.1} parent=15 // pred_fallthru
        _
      // Predicated region
      $region37: #{_prep_and_cost.1} parent=15 // pred_check
        %p316 = pneg %p192
      $region38: #{_prep_and_cost.1} parent=15 // pred_check_branch
        %318 = sbr.rel (%p316) target = $region40
      $region39: #{_prep_and_cost.1} parent=15 // pred_region
        %p319 = scmp.lt.s32.totalorder %s20, 1
        %s320 = scalar_select %p319, %s20, 1
        %p321 = scmp.lt.s32.totalorder %s21, 0
        %s322 = scalar_select %p321, %s21, 0
        %p323 = scmp.lt.s32.totalorder %s22, 0
        %s324 = scalar_select %p323, %s22, 0
        %s325 = sadd.s32 %s324, %s322
        %s326 = sadd.s32 %s325, %s320
        %s327 = smul.addr %s326, 4
        %s328 = scalar_lea.vmem %s5, %s327
      $region40: #{_prep_and_cost.1} parent=15 // pred_fallthru
        _
      // Predicated region
      $region41: #{_prep_and_cost.1} parent=15 // pred_check
        %p329 = pneg %p220
      $region42: #{_prep_and_cost.1} parent=15 // pred_check_branch
        %331 = sbr.rel (%p329) target = $region44
      $region43: #{_prep_and_cost.1} parent=15 // pred_region
        %s332 = smul.u32 16, %s22
        %p333 = scmp.lt.s32.totalorder %s20, 1
        %s334 = scalar_select %p333, %s20, 1
        %p335 = scmp.lt.s32.totalorder %s332, 15
        %s336 = scalar_select %p335, %s332, 15
        %s337 = smul.addr %s334, 16
        %s338 = sadd.s32 %s336, %s337
        %s339 = smul.addr %s338, 4
        %s340 = scalar_lea.vmem %s6, %s339
        %s341 = smul.u32 16, %s22
      $region44: #{_prep_and_cost.1} parent=15 // pred_fallthru
        _
    $region16: #{_prep_and_cost.1} parent=5 // pred_fallthru
      _
    %p342 = scmp.le.s32.totalorder 1, %s13
    %p343 = scmp.lt.s32.totalorder %s13, 3
    %p344 = pnand %p342, %p343
    %p345 = pneg %p344
    // Predicated region
    $region45: #{_prep_and_cost.1} parent=5 // pred_check
      _
    $region46: #{_prep_and_cost.1} parent=5 // pred_check_branch
      %347 = sbr.rel (%p344) target = $region48
    $region47: #{_prep_and_cost.1} parent=5 // pred_region
      %s348 = ssub.s32 %s13, 1
      %p349 = scmp.lt.s32.totalorder %s23, 1
      %s350 = scalar_select %p349, %s23, 1
      %p351 = scmp.lt.s32.totalorder %s24, 0
      %s352 = scalar_select %p351, %s24, 0
      %s353 = sadd.s32 %s352, %s350
      %s354 = smul.addr %s353, 4
      %s355 = scalar_lea.vmem %s0, %s354
      %p356 = pneg %p60
      %p357 = pneg %p57
      %p358 = scmp.lt.s32.totalorder %s23, 1
      %s359 = scalar_select %p358, %s23, 1
      %s360 = smul.addr %s359, 4
      %s361 = scalar_lea.vmem %s1, %s360
      %p362 = pneg %p86
      %p363 = pneg %p83
      %p364 = scmp.lt.s32.totalorder %s23, 1
      %s365 = scalar_select %p364, %s23, 1
      %p366 = scmp.lt.s32.totalorder %s24, 0
      %s367 = scalar_select %p366, %s24, 0
      %s368 = sadd.s32 %s367, %s365
      %s369 = smul.addr %s368, 8
      %s370 = scalar_lea.vmem %s2, %s369
      %p371 = pneg %p114
      %p372 = pneg %p111
      %p373 = scmp.lt.s32.totalorder %s23, 1
      %s374 = scalar_select %p373, %s23, 1
      %p375 = scmp.lt.s32.totalorder %s24, 0
      %s376 = scalar_select %p375, %s24, 0
      %s377 = sadd.s32 %s376, %s374
      %s378 = smul.addr %s377, 8
      %s379 = scalar_lea.vmem %s3, %s378
      %p380 = pneg %p142
      %p381 = pneg %p139
      %p382 = scmp.lt.s32.totalorder %s23, 1
      %s383 = scalar_select %p382, %s23, 1
      %s384 = scalar_lea.vmem %s4, %s383
      %p385 = pneg %p168
      %p386 = pneg %p165
      %p387 = scmp.lt.s32.totalorder %s23, 1
      %s388 = scalar_select %p387, %s23, 1
      %p389 = scmp.lt.s32.totalorder %s24, 0
      %s390 = scalar_select %p389, %s24, 0
      %p391 = scmp.lt.s32.totalorder %s25, 0
      %s392 = scalar_select %p391, %s25, 0
      %s393 = sadd.s32 %s392, %s390
      %s394 = sadd.s32 %s393, %s388
      %s395 = smul.addr %s394, 4
      %s396 = scalar_lea.vmem %s5, %s395
      %p397 = pneg %p198
      %p398 = pneg %p195
      %s399 = smul.u32 16, %s25
      %p400 = scmp.lt.s32.totalorder %s23, 1
      %s401 = scalar_select %p400, %s23, 1
      %p402 = scmp.lt.s32.totalorder %s399, 15
      %s403 = scalar_select %p402, %s399, 15
      %s404 = smul.addr %s401, 16
      %s405 = sadd.s32 %s403, %s404
      %s406 = smul.addr %s405, 4
      %s407 = scalar_lea.vmem %s6, %s406
      %p408 = pneg %p226
      %p409 = pneg %p223
      %p410 = pneg %p254
      %p411 = pneg %p251
      %p412 = scmp.lt.s32.totalorder %s23, 1
      %s413 = scalar_select %p412, %s23, 1
      %p414 = scmp.lt.s32.totalorder %s24, 0
      %s415 = scalar_select %p414, %s24, 0
      %s416 = sadd.s32 %s415, %s413
      %s417 = smul.addr %s416, 8
      %s418 = scalar_lea.vmem %s7, %s417
      %p419 = scmp.lt.s32.totalorder %s23, 1
      %s420 = scalar_select %p419, %s23, 1
      %p421 = scmp.lt.s32.totalorder %s24, 0
      %s422 = scalar_select %p421, %s24, 0
      %s423 = sadd.s32 %s422, %s420
      %s424 = smul.addr %s423, 4
      %s425 = scalar_lea.vmem %s0, %s424
      %p426 = scmp.lt.s32.totalorder %s23, 1
      %s427 = scalar_select %p426, %s23, 1
      %s428 = smul.addr %s427, 4
      %s429 = scalar_lea.vmem %s1, %s428
      %p430 = scmp.lt.s32.totalorder %s23, 1
      %s431 = scalar_select %p430, %s23, 1
      %p432 = scmp.lt.s32.totalorder %s24, 0
      %s433 = scalar_select %p432, %s24, 0
      %s434 = sadd.s32 %s433, %s431
      %s435 = smul.addr %s434, 8
      %s436 = scalar_lea.vmem %s2, %s435
      %p437 = scmp.lt.s32.totalorder %s23, 1
      %s438 = scalar_select %p437, %s23, 1
      %p439 = scmp.lt.s32.totalorder %s24, 0
      %s440 = scalar_select %p439, %s24, 0
      %s441 = sadd.s32 %s440, %s438
      %s442 = smul.addr %s441, 8
      %s443 = scalar_lea.vmem %s3, %s442
      %p444 = scmp.lt.s32.totalorder %s23, 1
      %s445 = scalar_select %p444, %s23, 1
      %s446 = scalar_lea.vmem %s4, %s445
      %p447 = scmp.lt.s32.totalorder %s23, 1
      %s448 = scalar_select %p447, %s23, 1
      %p449 = scmp.lt.s32.totalorder %s24, 0
      %s450 = scalar_select %p449, %s24, 0
      %p451 = scmp.lt.s32.totalorder %s25, 0
      %s452 = scalar_select %p451, %s25, 0
      %s453 = sadd.s32 %s452, %s450
      %s454 = sadd.s32 %s453, %s448
      %s455 = smul.addr %s454, 4
      %s456 = scalar_lea.vmem %s5, %s455
      %s457 = smul.u32 16, %s25
      %p458 = scmp.lt.s32.totalorder %s23, 1
      %s459 = scalar_select %p458, %s23, 1
      %p460 = scmp.lt.s32.totalorder %s457, 15
      %s461 = scalar_select %p460, %s457, 15
      %s462 = smul.addr %s459, 16
      %s463 = sadd.s32 %s461, %s462
      %s464 = smul.addr %s463, 4
      %s465 = scalar_lea.vmem %s6, %s464
      %s466 = smul.u32 16, %s25
      %p467 = scmp.lt.s32.totalorder %s23, 1
      %s468 = scalar_select %p467, %s23, 1
      %p469 = scmp.lt.s32.totalorder %s24, 0
      %s470 = scalar_select %p469, %s24, 0
      %s471 = sadd.s32 %s470, %s468
      %s472 = smul.addr %s471, 8
      %s473 = scalar_lea.vmem %s7, %s472
      %p476 = scmp.eq.s32.totalorder %s25, 0
      // Predicated region
      $region49: #{_prep_and_cost.1} parent=47 // pred_check
        %p477 = pneg %p476
      $region50: #{_prep_and_cost.1} parent=47 // pred_check_branch
        %479 = sbr.rel (%p477) target = $region52
      $region51: #{_prep_and_cost.1} parent=47 // pred_region
        %v480 = vld [vmem:[%s425] sm:$0xf]
        %v481 = vld [vmem:[%s429] sm:$0x7]
        %vm482 = vcmask 39936
        %v484 = vsel %vm482, %v480, 0
        %vm486 = vcmask 1041408
        %vm487 = vcmask 1042432
        %v488 = vsel %vm486, 4294967295, 65535
        %v489 = vsel %vm487, %v488, 0
        %v491 = vand.u32 %v481, %v489
        %493 = vmatprep.subr.bf16.mxu0 0
        %494 = vmatpush1.bf16.msra.mxu0 0
        %495 = vmatprep.subr.bf16.mxu0 0
        %496 = vmatpush1.bf16.msra.mxu0 0
        %497 = vmatprep.subr.bf16.mxu0 0
        %498 = vmatpush1.bf16.msra.mxu0 0
        %499 = vmatprep.subr.bf16.mxu0 0
        %500 = vmatpush1.bf16.msra.mxu0 0
        %501 = vmatprep.subr.bf16.mxu0 0
        %502 = vmatpush1.bf16.msra.mxu0 0
        %503 = vmatprep.subr.bf16.mxu0 0
        %504 = vmatpush1.bf16.msra.mxu0 0
        %505 = vmatprep.subr.bf16.mxu0 0
        %506 = vmatpush1.bf16.msra.mxu0 0
        %507 = vmatprep.subr.bf16.mxu0 0
        %508 = vmatpush1.bf16.msra.mxu0 %v491
        %509 = vmatprep.subr.bf16.mxu0 0
        %510 = vmatpush2.bf16.msra.mxu0 0
        %511 = vmatprep.subr.bf16.mxu0 0
        %512 = vmatpush2.bf16.msra.mxu0 0
        %513 = vmatprep.subr.bf16.mxu0 0
        %514 = vmatpush2.bf16.msra.mxu0 0
        %515 = vmatprep.subr.bf16.mxu0 0
        %516 = vmatpush2.bf16.msra.mxu0 0
        %517 = vmatprep.subr.bf16.mxu0 0
        %518 = vmatpush2.bf16.msra.mxu0 0
        %519 = vmatprep.subr.bf16.mxu0 0
        %520 = vmatpush2.bf16.msra.mxu0 0
        %521 = vmatprep.subr.bf16.mxu0 0
        %522 = vmatpush2.bf16.msra.mxu0 0
        %523 = vmatprep.subr.bf16.mxu0 0
        %524 = vmatpush2.bf16.msra.mxu0 0
        %525 = vmatprep.mubr.bf16.mxu0 0
        %526 = vmatmul.mubr.bf16.gmra.mxu0 %v484
        %v527 = vpop.f32.mrf.mxu0
        %v528 = vadd.f32 0.0, %v527
        %v529 = vpop.f32.mrf.mxu0
        %v530 = vpop.f32.mrf.mxu0
        %v531 = vpop.f32.mrf.mxu0
        %532 = vdwg.mxu0
        %v533 = vmul.f32 %v528, -1.0
        %v534 = vld [vmem:[%s436] sm:$0xff]
        %v535 = vmul.f32 %v534, 0.0078125
        %537 = vset.pattern.permute.xlu0 0
        %538 = vperm.xlu0 %537, %v535
        %v539 = vpop.permute.xlu0 %538
        %v541 = vadd.f32 %v533, %v539
        %542 = vst [vmem:[%s473] sm:$0xff] %v541
        %543 = vst [vmem:[#allocation2] sm:$0xff] 0.0
      $region52: #{_prep_and_cost.1} parent=47 // pred_fallthru
        _
      %v544 = vld [vmem:[%s456] sm:$0xf]
      %v545 = vld [vmem:[%s465] sm:$0xf]
      %v546 = vld [vmem:[%s465 + $0x4] sm:$0xf]
      %v547 = vld [vmem:[%s465 + $0x8] sm:$0xf]
      %v548 = vld [vmem:[%s465 + $0xc] sm:$0xf]
      %v549 = vld [vmem:[%s465 + $0x10] sm:$0xf]
      %v550 = vld [vmem:[%s465 + $0x14] sm:$0xf]
      %v551 = vld [vmem:[%s465 + $0x18] sm:$0xf]
      %v552 = vld [vmem:[%s465 + $0x1c] sm:$0xf]
      %v553 = vld [vmem:[%s465 + $0x20] sm:$0xf]
      %v554 = vld [vmem:[%s465 + $0x24] sm:$0xf]
      %v555 = vld [vmem:[%s465 + $0x28] sm:$0xf]
      %v556 = vld [vmem:[%s465 + $0x2c] sm:$0xf]
      %v557 = vld [vmem:[%s465 + $0x30] sm:$0xf]
      %v558 = vld [vmem:[%s465 + $0x34] sm:$0xf]
      %v559 = vld [vmem:[%s465 + $0x38] sm:$0xf]
      %v560 = vld [vmem:[%s465 + $0x3c] sm:$0xf]
      %v577 = vunpack.c.l.b16 %v545
      %v578 = vunpack.c.l.b16 %v546
      %v579 = vunpack.c.l.b16 %v547
      %v580 = vunpack.c.l.b16 %v548
      %v581 = vunpack.c.l.b16 %v549
      %v582 = vunpack.c.l.b16 %v550
      %v583 = vunpack.c.l.b16 %v551
      %v584 = vunpack.c.l.b16 %v552
      %v585 = vunpack.c.l.b16 %v553
      %v586 = vunpack.c.l.b16 %v554
      %v587 = vunpack.c.l.b16 %v555
      %v588 = vunpack.c.l.b16 %v556
      %v589 = vunpack.c.l.b16 %v557
      %v590 = vunpack.c.l.b16 %v558
      %v591 = vunpack.c.l.b16 %v559
      %v592 = vunpack.c.l.b16 %v560
      %v593 = vpack.c.b16 %v578, %v577
      %v594 = vpack.c.b16 %v580, %v579
      %v595 = vpack.c.b16 %v582, %v581
      %v596 = vpack.c.b16 %v584, %v583
      %v597 = vpack.c.b16 %v586, %v585
      %v598 = vpack.c.b16 %v588, %v587
      %v599 = vpack.c.b16 %v590, %v589
      %v600 = vpack.c.b16 %v592, %v591
      %609 = vmatprep.subr.bf16.mxu0 0
      %610 = vmatpush1.bf16.msra.mxu0 %v600
      %611 = vmatprep.subr.bf16.mxu0 0
      %612 = vmatpush1.bf16.msra.mxu0 %v599
      %613 = vmatprep.subr.bf16.mxu0 0
      %614 = vmatpush1.bf16.msra.mxu0 %v598
      %615 = vmatprep.subr.bf16.mxu0 0
      %616 = vmatpush1.bf16.msra.mxu0 %v597
      %617 = vmatprep.subr.bf16.mxu0 0
      %618 = vmatpush1.bf16.msra.mxu0 %v596
      %619 = vmatprep.subr.bf16.mxu0 0
      %620 = vmatpush1.bf16.msra.mxu0 %v595
      %621 = vmatprep.subr.bf16.mxu0 0
      %622 = vmatpush1.bf16.msra.mxu0 %v594
      %623 = vmatprep.subr.bf16.mxu0 0
      %624 = vmatpush1.bf16.msra.mxu0 %v593
      %625 = vmatprep.subr.bf16.mxu0 0
      %626 = vmatpush2.bf16.msra.mxu0 0
      %627 = vmatprep.subr.bf16.mxu0 0
      %628 = vmatpush2.bf16.msra.mxu0 0
      %629 = vmatprep.subr.bf16.mxu0 0
      %630 = vmatpush2.bf16.msra.mxu0 0
      %631 = vmatprep.subr.bf16.mxu0 0
      %632 = vmatpush2.bf16.msra.mxu0 0
      %633 = vmatprep.subr.bf16.mxu0 0
      %634 = vmatpush2.bf16.msra.mxu0 0
      %635 = vmatprep.subr.bf16.mxu0 0
      %636 = vmatpush2.bf16.msra.mxu0 0
      %637 = vmatprep.subr.bf16.mxu0 0
      %638 = vmatpush2.bf16.msra.mxu0 0
      %639 = vmatprep.subr.bf16.mxu0 0
      %640 = vmatpush2.bf16.msra.mxu0 0
      %641 = vmatprep.mubr.bf16.mxu0 0
      %642 = vmatmul.mubr.bf16.gmra.mxu0 %v544
      %v643 = vpop.f32.mrf.mxu0
      %v644 = vadd.f32 0.0, %v643
      %v645 = vpop.f32.mrf.mxu0
      %v646 = vpop.f32.mrf.mxu0
      %v647 = vpop.f32.mrf.mxu0
      %648 = vdwg.mxu0
      %v649 = vld [vmem:[%s473] sm:$0xff]
      %v650 = vmul.f32 %v644, -0.0078125
      %v651 = vadd.f32 %v649, %v650
      %652 = vst [vmem:[%s473] sm:$0xff] %v651
      %v653 = vmul.bf16 %v544, 1056980736
      %v654 = vtanh.bf16.pop %v653
      %v655 = vmul.bf16 %v654, 1056980736
      %v656 = vadd.bf16 %v655, 1056980736
      %v657 = vld [vmem:[#allocation2] sm:$0xff]
      %658 = vmatprep.subr.bf16.mxu0 0
      %659 = vmatpush1.bf16.msra.mxu0 %v600
      %660 = vmatprep.subr.bf16.mxu0 0
      %661 = vmatpush1.bf16.msra.mxu0 %v599
      %662 = vmatprep.subr.bf16.mxu0 0
      %663 = vmatpush1.bf16.msra.mxu0 %v598
      %664 = vmatprep.subr.bf16.mxu0 0
      %665 = vmatpush1.bf16.msra.mxu0 %v597
      %666 = vmatprep.subr.bf16.mxu0 0
      %667 = vmatpush1.bf16.msra.mxu0 %v596
      %668 = vmatprep.subr.bf16.mxu0 0
      %669 = vmatpush1.bf16.msra.mxu0 %v595
      %670 = vmatprep.subr.bf16.mxu0 0
      %671 = vmatpush1.bf16.msra.mxu0 %v594
      %672 = vmatprep.subr.bf16.mxu0 0
      %673 = vmatpush1.bf16.msra.mxu0 %v593
      %674 = vmatprep.subr.bf16.mxu0 0
      %675 = vmatpush2.bf16.msra.mxu0 0
      %676 = vmatprep.subr.bf16.mxu0 0
      %677 = vmatpush2.bf16.msra.mxu0 0
      %678 = vmatprep.subr.bf16.mxu0 0
      %679 = vmatpush2.bf16.msra.mxu0 0
      %680 = vmatprep.subr.bf16.mxu0 0
      %681 = vmatpush2.bf16.msra.mxu0 0
      %682 = vmatprep.subr.bf16.mxu0 0
      %683 = vmatpush2.bf16.msra.mxu0 0
      %684 = vmatprep.subr.bf16.mxu0 0
      %685 = vmatpush2.bf16.msra.mxu0 0
      %686 = vmatprep.subr.bf16.mxu0 0
      %687 = vmatpush2.bf16.msra.mxu0 0
      %688 = vmatprep.subr.bf16.mxu0 0
      %689 = vmatpush2.bf16.msra.mxu0 0
      %690 = vmatprep.mubr.bf16.mxu0 0
      %691 = vmatmul.mubr.bf16.gmra.mxu0 %v656
      %v692 = vpop.f32.mrf.mxu0
      %v693 = vadd.f32 0.0, %v692
      %v694 = vpop.f32.mrf.mxu0
      %v695 = vpop.f32.mrf.mxu0
      %v696 = vpop.f32.mrf.mxu0
      %697 = vdwg.mxu0
      %v698 = vadd.f32 %v657, %v693
      %699 = vst [vmem:[#allocation2] sm:$0xff] %v698
      // Predicated region
      $region53: #{_prep_and_cost.1} parent=47 // pred_check
        %p700 = pneg %p476
      $region54: #{_prep_and_cost.1} parent=47 // pred_check_branch
        %702 = sbr.rel (%p700) target = $region56
      $region55: #{_prep_and_cost.1} parent=47 // pred_region
        %v703 = vld [vmem:[#allocation2] sm:$0xff]
        %v704 = vmul.f32 %v703, 2.0
        %v705 = vadd.f32 %v704, 1.0
        %v706 = vld [vmem:[%s443] sm:$0xff]
        %v707 = vld [vmem:[%s446] sm:$0x1]
        %709 = vset.pattern.permute.xlu0 0
        %710 = vperm.xlu0 %709, %v706
        %v711 = vpop.permute.xlu0 %710
        %v714 = vlaneseq
        %v715 = vshrl.u32 %v714, 7
        %v716 = vsub.s32 0, %v715
        %v717 = vrot.slane %v707, %v716
        %v719 = vadd.f32 %v711, %v717
        %v720 = vadd.f32 %v719, 1.0
        %v721 = vld [vmem:[%s473] sm:$0xff]
        %v722 = vrcp.pop %v720
        %v723 = vmul.f32 %v705, %v722
        %v724 = vsub.f32 1.0, %v723
        %v725 = vadd.f32 %v721, %v724
        %726 = vst [vmem:[%s473] sm:$0xff] %v725
      $region56: #{_prep_and_cost.1} parent=47 // pred_fallthru
        _
      %p727 = scmp.lt.s32.totalorder %s23, 1
      %s728 = scalar_select %p727, %s23, 1
      %p729 = scmp.lt.s32.totalorder %s24, 0
      %s730 = scalar_select %p729, %s24, 0
      %s731 = sadd.s32 %s730, %s728
      %s732 = smul.addr %s731, 8
      %s733 = scalar_lea.vmem %s7, %s732
      // Predicated region
      $region57: #{_prep_and_cost.1} parent=47 // pred_check
        %p734 = pneg %p251
      $region58: #{_prep_and_cost.1} parent=47 // pred_check_branch
        %736 = sbr.rel (%p734) target = $region60
      $region59: #{_prep_and_cost.1} parent=47 // pred_region
        _
      $region60: #{_prep_and_cost.1} parent=47 // pred_fallthru
        _
    $region48: #{_prep_and_cost.1} parent=5 // pred_fallthru
      _
    %p737 = scmp.le.s32.totalorder 2, %s13
    // Predicated region
    $region61: #{_prep_and_cost.1} parent=5 // pred_check
      %p738 = pneg %p737
    $region62: #{_prep_and_cost.1} parent=5 // pred_check_branch
      %740 = sbr.rel (%p738) target = $region64
    $region63: #{_prep_and_cost.1} parent=5 // pred_region
      %s741 = ssub.s32 %s13, 2
      // Predicated region
      $region65: #{_prep_and_cost.1} parent=63 // pred_check
        %p742 = pneg %p257
      $region66: #{_prep_and_cost.1} parent=63 // pred_check_branch
        %744 = sbr.rel (%p742) target = $region68
      $region67: #{_prep_and_cost.1} parent=63 // pred_region
        %p745 = scmp.lt.s32.totalorder %s26, 1
        %s746 = scalar_select %p745, %s26, 1
        %p747 = scmp.lt.s32.totalorder %s27, 0
        %s748 = scalar_select %p747, %s27, 0
        %s749 = sadd.s32 %s748, %s746
        %s750 = smul.addr %s749, 8
        %s751 = scalar_lea.vmem %s7, %s750
      $region68: #{_prep_and_cost.1} parent=63 // pred_fallthru
        _
    $region64: #{_prep_and_cost.1} parent=5 // pred_fallthru
      _
  $region6: #{_prep_and_cost.1} parent=0 // loop_footer
    %s17 = sadd.s32 1, %s13
  $region7: #{_prep_and_cost.1} parent=0 // loop_footer_branch
    %12 = sbr.rel target = $region3
  $region8: #{_prep_and_cost.1} parent=0 // loop_exit
    _

</llo_original>
